<compile_context>
chip_gen: v7x
topology: tpu7x:2x2x1
jax: 0.10.0
libtpu: 0.0.40
codegen_flags: <defaults>
</compile_context>

<pallas_src>
from typing import NamedTuple

import jax
import jax.numpy as jnp
from jax.experimental import pallas as pl
from jax.experimental.pallas import tpu as pltpu


# --------------------------------------------------------------------------- #
# Kernel
# --------------------------------------------------------------------------- #
def _bayes_linear_kernel(x_ref, x2_ref, wmu_ref, wvar_ref, bz_ref,
                         o_ref, gamma_acc, delta_acc):
    k = pl.program_id(2)

    @pl.when(k == 0)
    def _():
        gamma_acc[...] = jnp.zeros_like(gamma_acc)
        delta_acc[...] = jnp.zeros_like(delta_acc)

    # mean path:      accumulate X   @ W_mu   (MXU, f32 accumulation)
    gamma_acc[...] += jnp.dot(x_ref[...], wmu_ref[...],
                              preferred_element_type=jnp.float32)
    # variance path:  accumulate X^2 @ W_var  (X^2 precomputed in the wrapper)
    delta_acc[...] += jnp.dot(x2_ref[...], wvar_ref[...],
                              preferred_element_type=jnp.float32)

    @pl.when(k == pl.num_programs(2) - 1)
    def _():
        # Epilogue hoisted out of the K loop.  bz_ref rows: [b_mu, b_var, zeta].
        b_mu = bz_ref[0:1, :]
        b_var = bz_ref[1:2, :]
        zeta = bz_ref[2:3, :]
        gamma = gamma_acc[...] + b_mu
        delta = jnp.maximum(delta_acc[...] + b_var, 0.0)   # bf16-rounding insurance
        o_ref[...] = (gamma + jnp.sqrt(delta) * zeta).astype(o_ref.dtype)


# --------------------------------------------------------------------------- #
# Tiling / VMEM sizing helpers
# --------------------------------------------------------------------------- #
def _round_up(v, m):
    return ((v + m - 1) // m) * m


def _pad2(a, rows, cols):
    r, c = a.shape
    if r == rows and c == cols:
        return a
    return jnp.pad(a, ((0, rows - r), (0, cols - c)))


def _vmem_capacity_bytes():
    try:
        return int(pltpu.get_tpu_info().vmem_capacity_bytes)
    except Exception:
        return 64 * 1024 * 1024   # conservative fallback (v7x-sized)


def _vmem_footprint_bytes(tm, tn, tk):
    """Double-buffered working set of one grid step for the chosen tiles."""
    x_tile = tm * tk * 2        # bf16 X
    w_tile = tk * tn * 2        # bf16 weight
    out_tile = tm * tn * 4      # f32 output
    acc_tile = tm * tn * 4      # f32 accumulator
    bz_tile = 8 * tn * 4        # (3, tn) f32, sublane-padded to 8 rows
    # 2x = double buffering of every pipelined operand; accumulators are single.
    return 2 * (2 * x_tile + 2 * w_tile + out_tile + bz_tile) + 2 * acc_tile


def _generation_caps(vmem_cap):
    if vmem_cap >= 100 * 1024 * 1024:          # v5e / v6e: 128 MiB VMEM
        return 1024, 1024, 2048
    return 512, 512, 1024                      # v7x: 64 MiB per TensorCore


def _select_weight_tiles(fan_in, fan_out):
    """Pick (tn, tk) once at parameter-preparation time."""
    vmem_cap = _vmem_capacity_bytes()
    tm_cap, tn_cap, tk_cap = _generation_caps(vmem_cap)
    budget = int(vmem_cap * 0.6)

    n0 = _round_up(fan_out, 128)
    k0 = _round_up(fan_in, 128)
    tn = min(n0, tn_cap)
    tk = min(k0, tk_cap)

    # Keep >=2 N tiles when fan_out is large so v7x's two TensorCores both get work.
    if n0 // tn == 1 and n0 >= 512:
        tn = _round_up(pl.cdiv(n0, 2), 256)

    # Shrink K then N until the worst-case (tm = tm_cap) working set fits VMEM.
    while _vmem_footprint_bytes(tm_cap, tn, tk) > budget and tk > 256:
        tk = max(256, _round_up(tk // 2, 128))
    while _vmem_footprint_bytes(tm_cap, tn, tk) > budget and tn > 256:
        tn = max(256, _round_up(tn // 2, 128))
    return tn, tk, vmem_cap


def _pick_tm(batch, tn, tk, n_tiles_n, vmem_cap):
    """Pick tm per call from the actual batch (weights re-stream once per M tile)."""
    tm_cap, _, _ = _generation_caps(vmem_cap)
    budget = int(vmem_cap * 0.6)
    m0 = _round_up(max(batch, 8), 8)
    tm = min(m0, tm_cap)
    # v7x: if N has a single tile and the batch is big, split M so the 'parallel'
    # grid has >=2 tiles (harmless extra grid step on single-TC v5e/v6e).
    if n_tiles_n == 1 and m0 // tm == 1 and m0 >= 512:
        tm = _round_up(pl.cdiv(m0, 2), 256)
    while _vmem_footprint_bytes(tm, tn, tk) > budget and tm > 256:
        tm = max(256, _round_up(tm // 2, 8))
    return tm


# --------------------------------------------------------------------------- #
# Parameter preparation (out of the hot path) + forward
# --------------------------------------------------------------------------- #
class BayesLinearParams(NamedTuple):
    w_mu: jax.Array     # (Kp, Np) bf16, zero-padded
    w_var: jax.Array    # (Kp, Np) bf16, zero-padded
    bias: jax.Array     # (2,  Np) f32,  rows = [b_mu, b_var]
    fan_in: int
    fan_out: int
    tn: int
    tk: int
    vmem_cap: int


def prepare_bayes_linear_params(w_mu, w_var, b_mu, b_var):
    """Pad + cast the (static) parameters once; reuse across forward calls."""
    fan_in, fan_out = w_mu.shape
    tn, tk, vmem_cap = _select_weight_tiles(fan_in, fan_out)
    Np = _round_up(_round_up(fan_out, 128), tn)
    Kp = _round_up(_round_up(fan_in, 128), tk)

    w_mu_p = _pad2(w_mu.astype(jnp.float32), Kp, Np).astype(jnp.bfloat16)
    w_var_p = _pad2(w_var.astype(jnp.float32), Kp, Np).astype(jnp.bfloat16)
    bias = jnp.concatenate(
        [_pad2(jnp.reshape(b_mu, (1, fan_out)).astype(jnp.float32), 1, Np),
         _pad2(jnp.reshape(b_var, (1, fan_out)).astype(jnp.float32), 1, Np)],
        axis=0)                                                    # (2, Np) f32
    return BayesLinearParams(w_mu_p, w_var_p, bias, fan_in, fan_out, tn, tk, vmem_cap)


def bayes_linear_forward(params: BayesLinearParams, x, zeta):
    """x: (B, fan_in) f32; zeta: (1, fan_out) f32. Returns r: (B, fan_out) f32."""
    B, fan_in = x.shape
    assert fan_in == params.fan_in
    fan_out = params.fan_out
    # Only share_paremeters_among_samples=True (one zeta row) is supported.
    assert zeta.shape == (1, fan_out), "zeta must have shape (1, fan_out)"
    # TODO(synk): per-sample zeta ((B, fan_out), share_paremeters_among_samples=False)
    # would need a (tm, tn) zeta BlockSpec; not implemented here.

    tn, tk = params.tn, params.tk
    Kp, Np = params.w_mu.shape
    n_tiles_n = Np // tn
    tm = _pick_tm(B, tn, tk, n_tiles_n, params.vmem_cap)
    Mp = _round_up(_round_up(B, 8), tm)

    # X changes every call: pad + cast per call.  X^2 is squared once in f32, then
    # cast to bf16 (shared across all N tiles via its own input stream).
    xf = x.astype(jnp.float32)
    xb = _pad2(xf, Mp, Kp).astype(jnp.bfloat16)
    x2b = _pad2(xf * xf, Mp, Kp).astype(jnp.bfloat16)

    # Pack [b_mu; b_var; zeta] into one (3, Np) f32 array -> single small DMA/tile.
    bz = jnp.concatenate(
        [params.bias, _pad2(zeta.astype(jnp.float32), 1, Np)], axis=0)

    grid = (Mp // tm, Np // tn, Kp // tk)
    m_tiles, n_tiles = grid[0], grid[1]

    footprint = _vmem_footprint_bytes(tm, tn, tk)
    vmem_limit = int(min(max(footprint * 1.3, 16 * 1024 * 1024),
                         params.vmem_cap * 0.9))

    cost = pl.CostEstimate(
        flops=2 * 2 * Mp * Kp * Np,                       # two matmuls
        transcendentals=Mp * Np,                          # sqrt in the epilogue
        bytes_accessed=(
            2 * (Mp * Kp * 2) * n_tiles                   # X and X^2, once per N tile
            + 2 * (Kp * Np * 2) * m_tiles                 # W_mu and W_var, once per M tile
            + 3 * Np * 4 * m_tiles                        # packed bias/zeta
            + Mp * Np * 4                                 # output writeback
        ),
    )

    out_padded = pl.pallas_call(
        _bayes_linear_kernel,
        out_shape=jax.ShapeDtypeStruct((Mp, Np), jnp.float32),
        grid_spec=pltpu.PrefetchScalarGridSpec(
            num_scalar_prefetch=0,
            grid=grid,
            in_specs=[
                pl.BlockSpec((tm, tk), lambda i, j, k: (i, k)),   # X
                pl.BlockSpec((tm, tk), lambda i, j, k: (i, k)),   # X^2
                pl.BlockSpec((tk, tn), lambda i, j, k: (k, j)),   # W_mu
                pl.BlockSpec((tk, tn), lambda i, j, k: (k, j)),   # W_var
                pl.BlockSpec((3, tn), lambda i, j, k: (0, j)),    # [b_mu; b_var; zeta]
            ],
            out_specs=pl.BlockSpec((tm, tn), lambda i, j, k: (i, j)),
            scratch_shapes=[
                pltpu.VMEM((tm, tn), jnp.float32),   # gamma accumulator
                pltpu.VMEM((tm, tn), jnp.float32),   # delta accumulator
            ],
        ),
        compiler_params=pltpu.CompilerParams(
            dimension_semantics=("parallel", "parallel", "arbitrary"),
            vmem_limit_bytes=vmem_limit,
        ),
        cost_estimate=cost,
    )(xb, x2b, params.w_mu, params.w_var, bz)

    return out_padded[:B, :fan_out]


def _rho2var(rho):
    # softplus(rho)^2 — numerically stable log(1 + exp(rho))^2
    return jnp.square(jax.nn.softplus(rho))


# --------------------------------------------------------------------------- #
# Demo / correctness check
# --------------------------------------------------------------------------- #
if __name__ == "__main__":
    batch, fan_in, fan_out = 8, 32, 64

    key = jax.random.PRNGKey(0)
    k_x, k_wmu, k_bmu, k_zeta = jax.random.split(key, 4)

    # Deterministic parameter init mirroring __init__:
    #   W_mu ~ N(0, 1); W_rho = log(exp(0.5) - 1)  -> W_var = softplus(W_rho)^2 = 0.25
    w_mu = jax.random.normal(k_wmu, (fan_in, fan_out), dtype=jnp.float32)
    w_rho = jnp.full((fan_in, fan_out), jnp.log(jnp.expm1(0.5)), dtype=jnp.float32)
    b_mu = jax.random.normal(k_bmu, (1, fan_out), dtype=jnp.float32)
    b_rho = jnp.full((1, fan_out), jnp.log(jnp.expm1(0.5)), dtype=jnp.float32)
    w_var = _rho2var(w_rho)
    b_var = _rho2var(b_rho)

    x = jax.random.normal(k_x, (batch, fan_in), dtype=jnp.float32)

    # share_paremeters_among_samples=True: one zeta row, broadcast across the batch
    # inside the kernel (equivalent to .repeat([B, 1])).
    # TODO(synk): zeta sampling itself (torch Normal.sample) is done host-side with
    # jax.random, not inside the kernel.
    zeta = jax.random.normal(k_zeta, (1, fan_out), dtype=jnp.float32)

    params = prepare_bayes_linear_params(w_mu, w_var, b_mu, b_var)  # one-time cast/pad
    r = bayes_linear_forward(params, x, zeta)
    r = jax.block_until_ready(r)

    # Reference check in plain JAX using the same bf16-matmul / f32-accumulate path.
    xb = x.astype(jnp.bfloat16)
    x2b = (x * x).astype(jnp.bfloat16)
    gamma_ref = jnp.dot(xb, w_mu.astype(jnp.bfloat16),
                        preferred_element_type=jnp.float32) + b_mu
    delta_ref = jnp.dot(x2b, w_var.astype(jnp.bfloat16),
                        preferred_element_type=jnp.float32) + b_var
    r_ref = gamma_ref + jnp.sqrt(jnp.maximum(delta_ref, 0.0)) * zeta

    assert r.shape == (batch, fan_out)
    assert jnp.allclose(r, r_ref, atol=1e-3, rtol=1e-3), (
        f"max abs err = {jnp.max(jnp.abs(r - r_ref))}")

    print("KERNEL_OK")
</pallas_src>

<mosaic_0001>
module attributes {stable_mosaic.version = 11 : i64} {
  func.func @_bayes_linear_kernel(%arg0: i32, %arg1: i32, %arg2: i32, %arg3: memref<8x128xbf16, #tpu.memory_space<vmem>>, %arg4: memref<8x128xbf16, #tpu.memory_space<vmem>>, %arg5: memref<128x128xbf16, #tpu.memory_space<vmem>>, %arg6: memref<128x128xbf16, #tpu.memory_space<vmem>>, %arg7: memref<3x128xf32, #tpu.memory_space<vmem>>, %arg8: memref<8x128xf32, #tpu.memory_space<vmem>>, %arg9: memref<8x128xf32, #tpu.memory_space<vmem>>, %arg10: memref<8x128xf32, #tpu.memory_space<vmem>>) attributes {dimension_semantics = [#tpu.dimension_semantics<parallel>, #tpu.dimension_semantics<parallel>, #tpu.dimension_semantics<arbitrary>], iteration_bounds = array<i64: 1, 1, 1>, scalar_prefetch = 0 : i64, scratch_operands = 2 : i64, tpu.core_type = #tpu.core_type<tc>, window_params = [{transform_indices = @transform_0, window_bounds = array<i64: 8, 128>}, {transform_indices = @transform_1, window_bounds = array<i64: 8, 128>}, {transform_indices = @transform_2, window_bounds = array<i64: 128, 128>}, {transform_indices = @transform_3, window_bounds = array<i64: 128, 128>}, {transform_indices = @transform_4, window_bounds = array<i64: 3, 128>}, {transform_indices = @transform_5, window_bounds = array<i64: 8, 128>}]} {
    %c0_i32 = arith.constant 0 : i32
    %0 = arith.cmpi eq, %arg2, %c0_i32 : i32
    %1 = arith.extui %0 : i1 to i32
    %c0_i32_0 = arith.constant 0 : i32
    %2 = arith.cmpi ne, %1, %c0_i32_0 : i32
    scf.if %2 {
      %cst_19 = arith.constant 0.000000e+00 : f32
      %18 = vector.broadcast %cst_19 : f32 to vector<8x128xf32>
      %c0_20 = arith.constant 0 : index
      %c0_21 = arith.constant 0 : index
      %19 = vector.load %arg9[%c0_20, %c0_21] : memref<8x128xf32, #tpu.memory_space<vmem>>, vector<8x128xf32>
      tpu.vector_store %arg9[%c0_20, %c0_21], %18 {strides = array<i32>} : memref<8x128xf32, #tpu.memory_space<vmem>>, vector<8x128xf32>,
      %cst_22 = arith.constant 0.000000e+00 : f32
      %20 = vector.broadcast %cst_22 : f32 to vector<8x128xf32>
      %c0_23 = arith.constant 0 : index
      %c0_24 = arith.constant 0 : index
      %21 = vector.load %arg10[%c0_23, %c0_24] : memref<8x128xf32, #tpu.memory_space<vmem>>, vector<8x128xf32>
      tpu.vector_store %arg10[%c0_23, %c0_24], %20 {strides = array<i32>} : memref<8x128xf32, #tpu.memory_space<vmem>>, vector<8x128xf32>,
    } else {
    }
    %c0 = arith.constant 0 : index
    %c0_1 = arith.constant 0 : index
    %3 = vector.load %arg9[%c0, %c0_1] : memref<8x128xf32, #tpu.memory_space<vmem>>, vector<8x128xf32>
    %c0_2 = arith.constant 0 : index
    %c0_3 = arith.constant 0 : index
    %4 = vector.load %arg3[%c0_2, %c0_3] : memref<8x128xbf16, #tpu.memory_space<vmem>>, vector<8x128xbf16>
    %c0_4 = arith.constant 0 : index
    %c0_5 = arith.constant 0 : index
    %5 = vector.load %arg5[%c0_4, %c0_5] : memref<128x128xbf16, #tpu.memory_space<vmem>>, vector<128x128xbf16>
    %cst = arith.constant dense<0.000000e+00> : vector<8x128xf32>
    %6 = tpu.matmul %4, %5, %cst {dimension_numbers = #tpu.dot_dimension_numbers<[1], [0], [0], [1], [0, 0, 1, 1], [], []>} : vector<8x128xbf16>, vector<128x128xbf16>, vector<8x128xf32> -> vector<8x128xf32>
    %7 = arith.addf %3, %6 : vector<8x128xf32>
    %c0_6 = arith.constant 0 : index
    %c0_7 = arith.constant 0 : index
    %8 = vector.load %arg9[%c0_6, %c0_7] : memref<8x128xf32, #tpu.memory_space<vmem>>, vector<8x128xf32>
    tpu.vector_store %arg9[%c0_6, %c0_7], %7 {strides = array<i32>} : memref<8x128xf32, #tpu.memory_space<vmem>>, vector<8x128xf32>,
    %c0_8 = arith.constant 0 : index
    %c0_9 = arith.constant 0 : index
    %9 = vector.load %arg10[%c0_8, %c0_9] : memref<8x128xf32, #tpu.memory_space<vmem>>, vector<8x128xf32>
    %c0_10 = arith.constant 0 : index
    %c0_11 = arith.constant 0 : index
    %10 = vector.load %arg4[%c0_10, %c0_11] : memref<8x128xbf16, #tpu.memory_space<vmem>>, vector<8x128xbf16>
    %c0_12 = arith.constant 0 : index
    %c0_13 = arith.constant 0 : index
    %11 = vector.load %arg6[%c0_12, %c0_13] : memref<128x128xbf16, #tpu.memory_space<vmem>>, vector<128x128xbf16>
    %cst_14 = arith.constant dense<0.000000e+00> : vector<8x128xf32>
    %12 = tpu.matmul %10, %11, %cst_14 {dimension_numbers = #tpu.dot_dimension_numbers<[1], [0], [0], [1], [0, 0, 1, 1], [], []>} : vector<8x128xbf16>, vector<128x128xbf16>, vector<8x128xf32> -> vector<8x128xf32>
    %13 = arith.addf %9, %12 : vector<8x128xf32>
    %c0_15 = arith.constant 0 : index
    %c0_16 = arith.constant 0 : index
    %14 = vector.load %arg10[%c0_15, %c0_16] : memref<8x128xf32, #tpu.memory_space<vmem>>, vector<8x128xf32>
    tpu.vector_store %arg10[%c0_15, %c0_16], %13 {strides = array<i32>} : memref<8x128xf32, #tpu.memory_space<vmem>>, vector<8x128xf32>,
    %c0_i32_17 = arith.constant 0 : i32
    %15 = arith.cmpi eq, %arg2, %c0_i32_17 : i32
    %16 = arith.extui %15 : i1 to i32
    %c0_i32_18 = arith.constant 0 : i32
    %17 = arith.cmpi ne, %16, %c0_i32_18 : i32
    scf.if %17 {
      %c0_19 = arith.constant 0 : index
      %c0_20 = arith.constant 0 : index
      %18 = vector.load %arg7[%c0_19, %c0_20] : memref<3x128xf32, #tpu.memory_space<vmem>>, vector<1x128xf32>
      %c1 = arith.constant 1 : index
      %c0_21 = arith.constant 0 : index
      %19 = vector.load %arg7[%c1, %c0_21] : memref<3x128xf32, #tpu.memory_space<vmem>>, vector<1x128xf32>
      %c2 = arith.constant 2 : index
      %c0_22 = arith.constant 0 : index
      %20 = vector.load %arg7[%c2, %c0_22] : memref<3x128xf32, #tpu.memory_space<vmem>>, vector<1x128xf32>
      %c0_23 = arith.constant 0 : index
      %c0_24 = arith.constant 0 : index
      %21 = vector.load %arg9[%c0_23, %c0_24] : memref<8x128xf32, #tpu.memory_space<vmem>>, vector<8x128xf32>
      %22 = vector.broadcast %18 : vector<1x128xf32> to vector<8x128xf32>
      %23 = arith.addf %21, %22 : vector<8x128xf32>
      %c0_25 = arith.constant 0 : index
      %c0_26 = arith.constant 0 : index
      %24 = vector.load %arg10[%c0_25, %c0_26] : memref<8x128xf32, #tpu.memory_space<vmem>>, vector<8x128xf32>
      %25 = vector.broadcast %19 : vector<1x128xf32> to vector<8x128xf32>
      %26 = arith.addf %24, %25 : vector<8x128xf32>
      %cst_27 = arith.constant 0.000000e+00 : f32
      %27 = vector.broadcast %cst_27 : f32 to vector<8x128xf32>
      %28 = arith.maximumf %26, %27 : vector<8x128xf32>
      %29 = math.sqrt %28 : vector<8x128xf32>
      %30 = vector.broadcast %20 : vector<1x128xf32> to vector<8x128xf32>
      %31 = arith.mulf %29, %30 : vector<8x128xf32>
      %32 = arith.addf %23, %31 : vector<8x128xf32>
      %c0_28 = arith.constant 0 : index
      %c0_29 = arith.constant 0 : index
      %33 = vector.load %arg8[%c0_28, %c0_29] : memref<8x128xf32, #tpu.memory_space<vmem>>, vector<8x128xf32>
      tpu.vector_store %arg8[%c0_28, %c0_29], %32 {strides = array<i32>} : memref<8x128xf32, #tpu.memory_space<vmem>>, vector<8x128xf32>,
    } else {
    }
    return
  }
  func.func @transform_0(%arg0: i32, %arg1: i32, %arg2: i32) -> (i32, i32) {
    %c0_i32 = arith.constant 0 : i32
    return %arg0, %arg2 : i32, i32
  }
  func.func @transform_1(%arg0: i32, %arg1: i32, %arg2: i32) -> (i32, i32) {
    %c0_i32 = arith.constant 0 : i32
    return %arg0, %arg2 : i32, i32
  }
  func.func @transform_2(%arg0: i32, %arg1: i32, %arg2: i32) -> (i32, i32) {
    %c0_i32 = arith.constant 0 : i32
    return %arg2, %arg1 : i32, i32
  }
  func.func @transform_3(%arg0: i32, %arg1: i32, %arg2: i32) -> (i32, i32) {
    %c0_i32 = arith.constant 0 : i32
    return %arg2, %arg1 : i32, i32
  }
  func.func @transform_4(%arg0: i32, %arg1: i32, %arg2: i32) -> (i32, i32) {
    %c0_i32 = arith.constant 0 : i32
    %c0_i32_0 = arith.constant 0 : i32
    return %c0_i32, %arg1 : i32, i32
  }
  func.func @transform_5(%arg0: i32, %arg1: i32, %arg2: i32) -> (i32, i32) {
    %c0_i32 = arith.constant 0 : i32
    return %arg0, %arg1 : i32, i32
  }
}

</mosaic_0001>

<llo_original>
// kernel: tpu_custom_call.1
$region0: #{tpu_custom_call.1}
  #allocation0 [shape = 'u32[]', space=smem, size = 0x4, offset = 0x4, fixed_abs, tag = 'smem constant byte address 0x4 - core index']
  #allocation1 [shape = 'u32[144,128]{1,0:T(1,128)}', space=vmem, size = 0x12000, scoped, tag = 'internal scratch']
  #allocation2 [shape = 'f32[8,128]{1,0:T(8,128)}', space=vmem, size = 0x1000, scoped, tag = 'scratch operand']
  #allocation3 [shape = 'f32[8,128]{1,0:T(8,128)}', space=vmem, size = 0x1000, scoped, tag = 'scratch operand']
  %s0 = inlined_call_operand.hbm [shape: bf16[8,128], index: 0, kind: input, shape index: {}]
  %s1 = inlined_call_operand.hbm [shape: bf16[8,128], index: 1, kind: input, shape index: {}]
  %s2 = inlined_call_operand.hbm [shape: bf16[128,128], index: 2, kind: input, shape index: {}]
  %s3 = inlined_call_operand.hbm [shape: bf16[128,128], index: 3, kind: input, shape index: {}]
  %s4 = inlined_call_operand.vmem [shape: f32[3,128], index: 4, kind: input, shape index: {}]
  %s5 = inlined_call_operand.hbm [shape: f32[8,128], index: 5, kind: output, shape index: {}]
  %s6 = sld [smem:[#allocation0]]
  $region54: #{tpu_custom_call.1} parent=0
    _
  %s8 = ssub.s32 1, %s6
  %s9 = scalar_select 0, %s8, %s6
  $region1: #{tpu_custom_call.1} parent=0
    #allocation4 [shape = 'u8[2048]{0}', space=vmem, size = 0x800, scoped, tag = 'input window, operand 0, single buffered']
    #allocation5 [shape = 's32[1]{0}', space=sflag, size = 0x4, scoped, tag = 'scoped memory for tpu_custom_call.1']
    #allocation6 [shape = 's32[1]{0}', space=sflag, size = 0x4, scoped, tag = 'scoped memory for tpu_custom_call.1']
    #allocation7 [shape = 'u8[2048]{0}', space=vmem, size = 0x800, scoped, tag = 'input window, operand 1, single buffered']
    #allocation8 [shape = 's32[1]{0}', space=sflag, size = 0x4, scoped, tag = 'scoped memory for tpu_custom_call.1']
    #allocation9 [shape = 'u8[32768]{0}', space=vmem, size = 0x8000, scoped, tag = 'input window, operand 2, single buffered']
    #allocation10 [shape = 'u8[32768]{0}', space=vmem, size = 0x8000, scoped, tag = 'input window, operand 3, single buffered']
    #allocation11 [shape = 's32[1]{0}', space=sflag, size = 0x4, scoped, tag = 'scoped memory for tpu_custom_call.1']
    #allocation12 [shape = 'u8[4096]{0}', space=vmem, size = 0x1000, scoped, tag = 'output window, operand 0, single buffered']
    %10 = vsyncpa [#allocation5], 0
    %11 = vsyncpa [#allocation8], 0
    %12 = vsyncpa [#allocation11], 0
    %13 = vsyncpa [#allocation6], 0
    // Predicated region
    $region2: #{tpu_custom_call.1} parent=1 // pred_check
      _
    $region3: #{tpu_custom_call.1} parent=1 // pred_check_branch
      %15 = sbr.rel (0) target = $region5
    $region4: #{tpu_custom_call.1} parent=1 // pred_region
      %s17 = ssub.s32 64, 64
      %18 = vsyncadd [#allocation5], %s17
      %s20 = sshll.u32 [#allocation4], 4
      %s21 = int_to_ptr.vmem [resolvable:$true] %s20
      %23 = dma.hbm_to_vmem [thread:$0]  %s0, 64, %s21, [#allocation5]
    $region5: #{tpu_custom_call.1} parent=1 // pred_fallthru
      _
    // Predicated region
    $region6: #{tpu_custom_call.1} parent=1 // pred_check
      _
    $region7: #{tpu_custom_call.1} parent=1 // pred_check_branch
      %25 = sbr.rel (0) target = $region9
    $region8: #{tpu_custom_call.1} parent=1 // pred_region
      %s27 = ssub.s32 64, 64
      %28 = vsyncadd [#allocation8], %s27
      %s30 = sshll.u32 [#allocation7], 4
      %s31 = int_to_ptr.vmem [resolvable:$true] %s30
      %33 = dma.hbm_to_vmem [thread:$0]  %s1, 64, %s31, [#allocation8]
    $region9: #{tpu_custom_call.1} parent=1 // pred_fallthru
      _
    // Predicated region
    $region10: #{tpu_custom_call.1} parent=1 // pred_check
      _
    $region11: #{tpu_custom_call.1} parent=1 // pred_check_branch
      %35 = sbr.rel (0) target = $region13
    $region12: #{tpu_custom_call.1} parent=1 // pred_region
      %s37 = ssub.s32 1024, 1024
      %38 = vsyncadd [#allocation8], %s37
      %s39 = sshll.u32 [#allocation9], 4
      %s40 = int_to_ptr.vmem [resolvable:$true] %s39
      %45 = dma.hbm_to_vmem [thread:$0]  %s2, 1024, %s40, [#allocation8], 64, 64, 4
    $region13: #{tpu_custom_call.1} parent=1 // pred_fallthru
      _
    // Predicated region
    $region14: #{tpu_custom_call.1} parent=1 // pred_check
      _
    $region15: #{tpu_custom_call.1} parent=1 // pred_check_branch
      %47 = sbr.rel (0) target = $region17
    $region16: #{tpu_custom_call.1} parent=1 // pred_region
      %s49 = ssub.s32 1024, 1024
      %50 = vsyncadd [#allocation11], %s49
      %s51 = sshll.u32 [#allocation10], 4
      %s52 = int_to_ptr.vmem [resolvable:$true] %s51
      %57 = dma.hbm_to_vmem [thread:$0]  %s3, 1024, %s52, [#allocation11], 64, 64, 4
    $region17: #{tpu_custom_call.1} parent=1 // pred_fallthru
      _
    // Predicated region
    $region18: #{tpu_custom_call.1} parent=1 // pred_check
      _
    $region19: #{tpu_custom_call.1} parent=1 // pred_check_branch
      %59 = sbr.rel (0) target = $region21
    $region20: #{tpu_custom_call.1} parent=1 // pred_region
      _
    $region21: #{tpu_custom_call.1} parent=1 // pred_fallthru
      _
    // Predicated region
    $region22: #{tpu_custom_call.1} parent=1 // pred_check
      _
    $region23: #{tpu_custom_call.1} parent=1 // pred_check_branch
      %61 = sbr.rel (0) target = $region25
    $region24: #{tpu_custom_call.1} parent=1 // pred_region
      %62 = dma.done [#allocation5], 64
    $region25: #{tpu_custom_call.1} parent=1 // pred_fallthru
      _
    // Predicated region
    $region26: #{tpu_custom_call.1} parent=1 // pred_check
      _
    $region27: #{tpu_custom_call.1} parent=1 // pred_check_branch
      %64 = sbr.rel (0) target = $region29
    $region28: #{tpu_custom_call.1} parent=1 // pred_region
      %65 = dma.done [#allocation8], 64
    $region29: #{tpu_custom_call.1} parent=1 // pred_fallthru
      _
    // Predicated region
    $region30: #{tpu_custom_call.1} parent=1 // pred_check
      _
    $region31: #{tpu_custom_call.1} parent=1 // pred_check_branch
      %67 = sbr.rel (0) target = $region33
    $region32: #{tpu_custom_call.1} parent=1 // pred_region
      %68 = dma.done [#allocation8], 1024
    $region33: #{tpu_custom_call.1} parent=1 // pred_fallthru
      _
    // Predicated region
    $region34: #{tpu_custom_call.1} parent=1 // pred_check
      _
    $region35: #{tpu_custom_call.1} parent=1 // pred_check_branch
      %70 = sbr.rel (0) target = $region37
    $region36: #{tpu_custom_call.1} parent=1 // pred_region
      %71 = dma.done [#allocation11], 1024
    $region37: #{tpu_custom_call.1} parent=1 // pred_fallthru
      _
    %p73 = scmp.eq.s32.totalorder 0, 0
    // Predicated region
    $region38: #{tpu_custom_call.1} parent=1 // pred_check
      %p74 = pneg %p73
    $region39: #{tpu_custom_call.1} parent=1 // pred_check_branch
      %76 = sbr.rel (%p74) target = $region41
    $region40: #{tpu_custom_call.1} parent=1 // pred_region
      %77 = vst [vmem:[#allocation2] sm:$0xff] 0.0
      %78 = vst [vmem:[#allocation3] sm:$0xff] 0.0
    $region41: #{tpu_custom_call.1} parent=1 // pred_fallthru
      _
    %v79 = vld [vmem:[#allocation2] sm:$0xff]
    %v80 = vld [vmem:[#allocation4] sm:$0xf]
    %v81 = vld [vmem:[#allocation9] sm:$0xf]
    %v82 = vld [vmem:[#allocation9 + $0x4] sm:$0xf]
    %v83 = vld [vmem:[#allocation9 + $0x8] sm:$0xf]
    %v84 = vld [vmem:[#allocation9 + $0xc] sm:$0xf]
    %v85 = vld [vmem:[#allocation9 + $0x10] sm:$0xf]
    %v86 = vld [vmem:[#allocation9 + $0x14] sm:$0xf]
    %v87 = vld [vmem:[#allocation9 + $0x18] sm:$0xf]
    %v88 = vld [vmem:[#allocation9 + $0x1c] sm:$0xf]
    %v89 = vld [vmem:[#allocation9 + $0x20] sm:$0xf]
    %v90 = vld [vmem:[#allocation9 + $0x24] sm:$0xf]
    %v91 = vld [vmem:[#allocation9 + $0x28] sm:$0xf]
    %v92 = vld [vmem:[#allocation9 + $0x2c] sm:$0xf]
    %v93 = vld [vmem:[#allocation9 + $0x30] sm:$0xf]
    %v94 = vld [vmem:[#allocation9 + $0x34] sm:$0xf]
    %v95 = vld [vmem:[#allocation9 + $0x38] sm:$0xf]
    %v96 = vld [vmem:[#allocation9 + $0x3c] sm:$0xf]
    %v113 = vunpack.c.l.b16 %v81
    %v114 = vunpack.c.l.b16 %v82
    %v115 = vunpack.c.l.b16 %v83
    %v116 = vunpack.c.l.b16 %v84
    %v117 = vunpack.c.l.b16 %v85
    %v118 = vunpack.c.l.b16 %v86
    %v119 = vunpack.c.l.b16 %v87
    %v120 = vunpack.c.l.b16 %v88
    %v121 = vunpack.c.l.b16 %v89
    %v122 = vunpack.c.l.b16 %v90
    %v123 = vunpack.c.l.b16 %v91
    %v124 = vunpack.c.l.b16 %v92
    %v125 = vunpack.c.l.b16 %v93
    %v126 = vunpack.c.l.b16 %v94
    %v127 = vunpack.c.l.b16 %v95
    %v128 = vunpack.c.l.b16 %v96
    %v129 = vpack.c.b16 %v114, %v113
    %v130 = vpack.c.b16 %v116, %v115
    %v131 = vpack.c.b16 %v118, %v117
    %v132 = vpack.c.b16 %v120, %v119
    %v133 = vpack.c.b16 %v122, %v121
    %v134 = vpack.c.b16 %v124, %v123
    %v135 = vpack.c.b16 %v126, %v125
    %v136 = vpack.c.b16 %v128, %v127
    %145 = vmatprep.subr.bf16.mxu0 0
    %146 = vmatpush1.bf16.msra.mxu0 %v129
    %147 = vmatprep.subr.bf16.mxu0 0
    %148 = vmatpush1.bf16.msra.mxu0 %v130
    %149 = vmatprep.subr.bf16.mxu0 0
    %150 = vmatpush1.bf16.msra.mxu0 %v131
    %151 = vmatprep.subr.bf16.mxu0 0
    %152 = vmatpush1.bf16.msra.mxu0 %v132
    %153 = vmatprep.subr.bf16.mxu0 0
    %154 = vmatpush1.bf16.msra.mxu0 %v133
    %155 = vmatprep.subr.bf16.mxu0 0
    %156 = vmatpush1.bf16.msra.mxu0 %v134
    %157 = vmatprep.subr.bf16.mxu0 0
    %158 = vmatpush1.bf16.msra.mxu0 %v135
    %159 = vmatprep.subr.bf16.mxu0 0
    %160 = vmatpush1.bf16.msra.mxu0 %v136
    %161 = vmatprep.subr.bf16.mxu0 0
    %162 = vmatpush1.bf16.msra.mxu0 0
    %163 = vmatprep.subr.bf16.mxu0 0
    %164 = vmatpush1.bf16.msra.mxu0 0
    %165 = vmatprep.subr.bf16.mxu0 0
    %166 = vmatpush1.bf16.msra.mxu0 0
    %167 = vmatprep.subr.bf16.mxu0 0
    %168 = vmatpush1.bf16.msra.mxu0 0
    %169 = vmatprep.subr.bf16.mxu0 0
    %170 = vmatpush1.bf16.msra.mxu0 0
    %171 = vmatprep.subr.bf16.mxu0 0
    %172 = vmatpush1.bf16.msra.mxu0 0
    %173 = vmatprep.subr.bf16.mxu0 0
    %174 = vmatpush1.bf16.msra.mxu0 0
    %175 = vmatprep.subr.bf16.mxu0 0
    %176 = vmatpush1.bf16.msra.mxu0 0
    %177 = vmatprep.mubr.bf16.mxu0 0
    %178 = vmatmul.mubr.bf16.gmra.mrb[0].mxu0 %v80
    %v179 = vpop.f32.mrb[0].mxu0
    %v180 = vadd.f32 0.0, %v179
    %v181 = vpop.f32.mrb[0].mxu0
    %v182 = vpop.f32.mrb[0].mxu0
    %v183 = vpop.f32.mrb[0].mxu0
    %184 = vdwg.mxu0
    %v185 = vadd.f32 %v79, %v180
    %186 = vst [vmem:[#allocation2] sm:$0xff] %v185
    %v187 = vld [vmem:[#allocation3] sm:$0xff]
    %v188 = vld [vmem:[#allocation7] sm:$0xf]
    %v189 = vld [vmem:[#allocation10] sm:$0xf]
    %v190 = vld [vmem:[#allocation10 + $0x4] sm:$0xf]
    %v191 = vld [vmem:[#allocation10 + $0x8] sm:$0xf]
    %v192 = vld [vmem:[#allocation10 + $0xc] sm:$0xf]
    %v193 = vld [vmem:[#allocation10 + $0x10] sm:$0xf]
    %v194 = vld [vmem:[#allocation10 + $0x14] sm:$0xf]
    %v195 = vld [vmem:[#allocation10 + $0x18] sm:$0xf]
    %v196 = vld [vmem:[#allocation10 + $0x1c] sm:$0xf]
    %v197 = vld [vmem:[#allocation10 + $0x20] sm:$0xf]
    %v198 = vld [vmem:[#allocation10 + $0x24] sm:$0xf]
    %v199 = vld [vmem:[#allocation10 + $0x28] sm:$0xf]
    %v200 = vld [vmem:[#allocation10 + $0x2c] sm:$0xf]
    %v201 = vld [vmem:[#allocation10 + $0x30] sm:$0xf]
    %v202 = vld [vmem:[#allocation10 + $0x34] sm:$0xf]
    %v203 = vld [vmem:[#allocation10 + $0x38] sm:$0xf]
    %v204 = vld [vmem:[#allocation10 + $0x3c] sm:$0xf]
    %v221 = vunpack.c.l.b16 %v189
    %v222 = vunpack.c.l.b16 %v190
    %v223 = vunpack.c.l.b16 %v191
    %v224 = vunpack.c.l.b16 %v192
    %v225 = vunpack.c.l.b16 %v193
    %v226 = vunpack.c.l.b16 %v194
    %v227 = vunpack.c.l.b16 %v195
    %v228 = vunpack.c.l.b16 %v196
    %v229 = vunpack.c.l.b16 %v197
    %v230 = vunpack.c.l.b16 %v198
    %v231 = vunpack.c.l.b16 %v199
    %v232 = vunpack.c.l.b16 %v200
    %v233 = vunpack.c.l.b16 %v201
    %v234 = vunpack.c.l.b16 %v202
    %v235 = vunpack.c.l.b16 %v203
    %v236 = vunpack.c.l.b16 %v204
    %v237 = vpack.c.b16 %v222, %v221
    %v238 = vpack.c.b16 %v224, %v223
    %v239 = vpack.c.b16 %v226, %v225
    %v240 = vpack.c.b16 %v228, %v227
    %v241 = vpack.c.b16 %v230, %v229
    %v242 = vpack.c.b16 %v232, %v231
    %v243 = vpack.c.b16 %v234, %v233
    %v244 = vpack.c.b16 %v236, %v235
    %253 = vmatprep.subr.bf16.mxu0 0
    %254 = vmatpush1.bf16.msra.mxu0 %v237
    %255 = vmatprep.subr.bf16.mxu0 0
    %256 = vmatpush1.bf16.msra.mxu0 %v238
    %257 = vmatprep.subr.bf16.mxu0 0
    %258 = vmatpush1.bf16.msra.mxu0 %v239
    %259 = vmatprep.subr.bf16.mxu0 0
    %260 = vmatpush1.bf16.msra.mxu0 %v240
    %261 = vmatprep.subr.bf16.mxu0 0
    %262 = vmatpush1.bf16.msra.mxu0 %v241
    %263 = vmatprep.subr.bf16.mxu0 0
    %264 = vmatpush1.bf16.msra.mxu0 %v242
    %265 = vmatprep.subr.bf16.mxu0 0
    %266 = vmatpush1.bf16.msra.mxu0 %v243
    %267 = vmatprep.subr.bf16.mxu0 0
    %268 = vmatpush1.bf16.msra.mxu0 %v244
    %269 = vmatprep.subr.bf16.mxu0 0
    %270 = vmatpush1.bf16.msra.mxu0 0
    %271 = vmatprep.subr.bf16.mxu0 0
    %272 = vmatpush1.bf16.msra.mxu0 0
    %273 = vmatprep.subr.bf16.mxu0 0
    %274 = vmatpush1.bf16.msra.mxu0 0
    %275 = vmatprep.subr.bf16.mxu0 0
    %276 = vmatpush1.bf16.msra.mxu0 0
    %277 = vmatprep.subr.bf16.mxu0 0
    %278 = vmatpush1.bf16.msra.mxu0 0
    %279 = vmatprep.subr.bf16.mxu0 0
    %280 = vmatpush1.bf16.msra.mxu0 0
    %281 = vmatprep.subr.bf16.mxu0 0
    %282 = vmatpush1.bf16.msra.mxu0 0
    %283 = vmatprep.subr.bf16.mxu0 0
    %284 = vmatpush1.bf16.msra.mxu0 0
    %285 = vmatprep.mubr.bf16.mxu0 0
    %286 = vmatmul.mubr.bf16.gmra.mrb[0].mxu0 %v188
    %v287 = vpop.f32.mrb[0].mxu0
    %v288 = vadd.f32 0.0, %v287
    %v289 = vpop.f32.mrb[0].mxu0
    %v290 = vpop.f32.mrb[0].mxu0
    %v291 = vpop.f32.mrb[0].mxu0
    %292 = vdwg.mxu0
    %v293 = vadd.f32 %v187, %v288
    %294 = vst [vmem:[#allocation3] sm:$0xff] %v293
    // Predicated region
    $region42: #{tpu_custom_call.1} parent=1 // pred_check
      %p295 = pneg %p73
    $region43: #{tpu_custom_call.1} parent=1 // pred_check_branch
      %297 = sbr.rel (%p295) target = $region45
    $region44: #{tpu_custom_call.1} parent=1 // pred_region
      %v298 = vld [vmem:[%s4] sm:$0x1]
      %v299 = vld [vmem:[%s4 + $0x1] sm:$0x1]
      %v300 = vld [vmem:[%s4 + $0x2] sm:$0x1]
      %v301 = vld [vmem:[#allocation2] sm:$0xff]
      %v302 = vlaneseq
      %v303 = vshrl.u32 %v302, 7
      %v304 = vsub.s32 0, %v303
      %v305 = vrot.slane %v298, %v304
      %v306 = vadd.f32 %v301, %v305
      %v307 = vld [vmem:[#allocation3] sm:$0xff]
      %v308 = vlaneseq
      %v309 = vshrl.u32 %v308, 7
      %v310 = vsub.s32 0, %v309
      %v311 = vrot.slane %v299, %v310
      %v312 = vadd.f32 %v307, %v311
      %v313 = vmax.f32 %v312, 0.0
      %v314 = vrsqrt.pop %v313
      %v315 = vmul.f32 %v313, %v314
      %vm316 = vcmp.eq.f32.partialorder %v313, inf
      %v317 = vsel %vm316, %v313, %v315
      %vm318 = vcmp.eq.f32.partialorder %v313, 0.0
      %v319 = vand.u32 %v313, 2147483648
      %v320 = vsel %vm318, %v319, %v317
      %v321 = vlaneseq
      %v322 = vshrl.u32 %v321, 7
      %v323 = vsub.s32 0, %v322
      %v324 = vrot.slane %v300, %v323
      %v325 = vmul.f32 %v320, %v324
      %v326 = vadd.f32 %v306, %v325
      %327 = vst [vmem:[#allocation12] sm:$0xff] %v326
    $region45: #{tpu_custom_call.1} parent=1 // pred_fallthru
      _
    // Predicated region
    $region46: #{tpu_custom_call.1} parent=1 // pred_check
      _
    $region47: #{tpu_custom_call.1} parent=1 // pred_check_branch
      %329 = sbr.rel (0) target = $region49
    $region48: #{tpu_custom_call.1} parent=1 // pred_region
      %s331 = ssub.s32 128, 128
      %332 = vsyncadd [#allocation6], %s331
      %s334 = sshll.u32 [#allocation12], 4
      %s335 = int_to_ptr.vmem [resolvable:$true] %s334
      %337 = dma.vmem_to_hbm [thread:$0]  %s335, 128, %s5, [#allocation6]
    $region49: #{tpu_custom_call.1} parent=1 // pred_fallthru
      _
    // Predicated region
    $region50: #{tpu_custom_call.1} parent=1 // pred_check
      _
    $region51: #{tpu_custom_call.1} parent=1 // pred_check_branch
      %339 = sbr.rel (0) target = $region53
    $region52: #{tpu_custom_call.1} parent=1 // pred_region
      %340 = dma.done [#allocation6], 128
    $region53: #{tpu_custom_call.1} parent=1 // pred_fallthru
      _
    %341 = vsyncpa [#allocation5], 1
    %342 = vsyncpa [#allocation8], 1
    %343 = vsyncpa [#allocation11], 1
    %344 = vsyncpa [#allocation6], 1

</llo_original>
